<compile_context>
chip_gen: v6e
topology: v6e:2x2x1
jax: 0.10.0
libtpu: 0.0.40
codegen_flags: <defaults>
</compile_context>

<pallas_src>
import functools
import math

import jax
import jax.numpy as jnp
from jax import lax
from jax.experimental import pallas as pl
from jax.experimental.pallas import tpu as pltpu

_CPAD = 16      # tiny input / final-conv channel counts padded up to this
_OUT_CPAD = 8   # f32 sublane tile: output channels padded to 8 (not 16)


# ----------------------------------------------------------------------------
# pltpu.roll convention probe (runs once, outside any jit trace; cached).
# ----------------------------------------------------------------------------
_ROLL_IS_NUMPY_LIKE = None


def _roll_is_numpy_like():
    """True iff pltpu.roll(x, s, axis) matches jnp.roll(x, s, axis)."""
    global _ROLL_IS_NUMPY_LIKE
    if _ROLL_IS_NUMPY_LIKE is None:
        def _k(x_ref, o_ref):
            o_ref[...] = pltpu.roll(x_ref[...], 1, axis=1)

        x = jnp.tile(lax.iota(jnp.float32, 128)[None, :], (8, 1))
        y = pl.pallas_call(
            _k, out_shape=jax.ShapeDtypeStruct((8, 128), jnp.float32)
        )(x)
        # numpy convention: rolling [0..127] by +1 puts 127 at position 0.
        _ROLL_IS_NUMPY_LIKE = bool(y[0, 0] == 127.0)
    return _ROLL_IS_NUMPY_LIKE


# ----------------------------------------------------------------------------
# Hoisted border masks: built once per resolution at the top of the kernel
# ----------------------------------------------------------------------------
def _build_border_masks(H, W):
    """List of 9 masks (None for the centre tap), each (1, H*W) bool."""
    n = H * W
    pos = lax.broadcasted_iota(jnp.int32, (1, n), 1)
    xcol = jnp.bitwise_and(pos, W - 1)            # W is a power of two
    masks = []
    for k in range(9):
        ky, kx = divmod(k, 3)
        conds = []
        if ky == 0:
            conds.append(pos >= W)                # source row y-1 exists
        elif ky == 2:
            conds.append(pos < (H - 1) * W)       # source row y+1 exists
        if kx == 0:
            conds.append(xcol > 0)                # source col x-1 exists
        elif kx == 2:
            conds.append(xcol < W - 1)            # source col x+1 exists
        if not conds:
            masks.append(None)
        else:
            m = conds[0]
            for c in conds[1:]:
                m = jnp.logical_and(m, c)
            masks.append(m)
    return masks


# ----------------------------------------------------------------------------
# In-kernel 3x3 "same" conv: bf16 taps written into a reused VMEM slab,
# then one K=9*Cin MXU matmul.  Epilogue (bias / ReLU) stays f32.
# ----------------------------------------------------------------------------
def _conv3x3(act_b, w2, b, slab_ref, *, relu, W, masks, roll_np):
    """act_b: (Cin, n) bf16.  w2: (Cout, 9*Cin) bf16, column = (ky*3+kx)*Cin+ci.
    b: (Cout, 1) f32 or None.  slab_ref: (>=9*Cin, >=n) bf16 VMEM scratch.
    Returns (Cout, n) f32."""
    cin, n = act_b.shape
    for k in range(9):
        ky, kx = divmod(k, 3)
        s = (ky - 1) * W + (kx - 1)               # flat source offset
        if s == 0:
            t = act_b
        else:
            amt = ((-s) if roll_np else s) % n
            t = pltpu.roll(act_b, amt, axis=1)    # t[c, p] = act[c, (p+s) % n]
        if masks[k] is not None:                  # zero-pad at image border
            t = jnp.where(masks[k], t, jnp.zeros_like(t))
        slab_ref[pl.ds(k * cin, cin), pl.ds(0, n)] = t
    slab = slab_ref[pl.ds(0, 9 * cin), pl.ds(0, n)]
    out = jnp.dot(w2, slab, preferred_element_type=jnp.float32)
    if b is not None:
        out = out + b
    if relu:
        out = jnp.maximum(out, 0.0)
    return out


# ----------------------------------------------------------------------------
# Fused whole-network kernel (one grid step = one batch element)
# ----------------------------------------------------------------------------
def _srresnet1_kernel(
    x_ref, w_head_ref, b_head_ref, w_body_ref, b_body_ref,
    w_up_ref, b_up_ref, w_t0_ref, b_t0_ref, w_t1_ref, w_fin_ref,
    x_out_ref, y_out_ref,
    slab_ref, hu_ref, hlo_ref,
    *, H, W, nb, roll_np,
):
    bf16 = jnp.bfloat16
    H2, W2 = 2 * H, 2 * W

    # Border masks hoisted: computed exactly once per resolution.
    masks_lo = _build_border_masks(H, W)
    masks_hi = _build_border_masks(H2, W2)

    def conv_lo(act_b, w, b, relu):
        return _conv3x3(act_b, w, b, slab_ref, relu=relu, W=W,
                        masks=masks_lo, roll_np=roll_np)

    def conv_hi(act_b, w, b, relu):
        return _conv3x3(act_b, w, b, slab_ref, relu=relu, W=W2,
                        masks=masks_hi, roll_np=roll_np)

    # head: Conv(in_nc -> nc)
    h0 = conv_lo(x_ref[...].astype(bf16), w_head_ref[...], b_head_ref[...], False)

    # body: ShortcutBlock( nb x ResBlock(Conv-ReLU-Conv) , Conv(nc -> nc) )
    h = h0
    for i in range(nb):
        t = conv_lo(h.astype(bf16), w_body_ref[2 * i], b_body_ref[2 * i], True)
        t = conv_lo(t.astype(bf16), w_body_ref[2 * i + 1], b_body_ref[2 * i + 1], False)
        h = h + t                                              # ResBlock add (f32)
    h = h0 + conv_lo(h.astype(bf16), w_body_ref[2 * nb], b_body_ref[2 * nb], False)

    # x2 nearest upsample, in-kernel: per source row, a tiny (W, 2W) 0/1
    # column-dup matmul + two lane-dense row stores into the bf16 scratch.
    hlo_ref[...] = h.astype(bf16)
    xi = lax.broadcasted_iota(jnp.int32, (W, W2), 0)
    qi = lax.broadcasted_iota(jnp.int32, (W, W2), 1)
    dup_mat = jnp.logical_and(qi >= 2 * xi, qi <= 2 * xi + 1).astype(bf16)
    for y in range(H):
        row = hlo_ref[:, pl.ds(y * W, W)]                      # (nc, W) bf16
        dup = jnp.dot(row, dup_mat,
                      preferred_element_type=jnp.float32).astype(bf16)  # (nc, 2W)
        hu_ref[:, pl.ds((2 * y) * W2, W2)] = dup
        hu_ref[:, pl.ds((2 * y + 1) * W2, W2)] = dup

    # up-conv + ReLU at high resolution
    h = conv_hi(hu_ref[...], w_up_ref[...], b_up_ref[...], True)

    # tail: Conv+ReLU , Conv(nc -> out_nc, no bias) ; then final conv
    h = conv_hi(h.astype(bf16), w_t0_ref[...], b_t0_ref[...], True)
    xo = conv_hi(h.astype(bf16), w_t1_ref[...], None, False)   # model output (16, n_hi)
    yo = conv_hi(xo.astype(bf16), w_fin_ref[...], None, False)  # final output (8, n_hi)

    x_out_ref[...] = xo[:x_out_ref.shape[0], :].astype(x_out_ref.dtype)
    y_out_ref[...] = yo.astype(y_out_ref.dtype)


# ----------------------------------------------------------------------------
# Host-side packing helpers
# ----------------------------------------------------------------------------
def _pack_w(w_hwio, cin_pad=None, cout_pad=None, dtype=jnp.bfloat16):
    """(3,3,Cin,Cout) HWIO -> (Cout[_pad], 9*Cin[_pad]) in kernel layout."""
    kh, kw, cin, cout = w_hwio.shape
    assert kh == 3 and kw == 3
    if cin_pad is not None and cin_pad != cin:
        w_hwio = jnp.pad(w_hwio, ((0, 0), (0, 0), (0, cin_pad - cin), (0, 0)))
        cin = cin_pad
    w = jnp.transpose(w_hwio, (3, 0, 1, 2)).reshape(cout, 9 * cin)
    if cout_pad is not None and cout_pad != cout:
        w = jnp.pad(w, ((0, cout_pad - cout), (0, 0)))
    return w.astype(dtype)


def _pack_b(b):
    return jnp.asarray(b, jnp.float32).reshape(-1, 1)


# ----------------------------------------------------------------------------
# Public forward pass (NCHW in / NCHW out, matching the PyTorch module)
# ----------------------------------------------------------------------------
def srresnet1_forward(x_nchw, params, *, mxu_dtype=jnp.bfloat16, interpret=False):
    N, in_nc, H, W = x_nchw.shape
    nc = params["head"][0].shape[3]
    out_nc = params["tail1"][0].shape[3]
    nb = len(params["res"])
    cp = _CPAD
    out_cp = _OUT_CPAD
    hw_lo, hw_hi = H * W, 4 * H * W
    H2, W2 = 2 * H, 2 * W

    # TODO(synk): for realistic SR resolutions add spatial tiling with 1-pixel
    # halos (tile sized against 64 MiB VMEM on v7x); and when N == 1 on v7x,
    # split H into two parallel halves so both TensorCores are occupied.
    assert W & (W - 1) == 0, "kernel requires power-of-two W"
    assert hw_lo % 128 == 0, "kernel requires H*W to be a multiple of 128"
    assert in_nc <= cp and out_nc <= out_cp
    assert nc >= cp and nc % 16 == 0, "nc must be a multiple of 16 (bf16 sublane tile)"

    # ---- host-side packing (once); weights go to bf16 for the MXU ----------
    x_flat = x_nchw.reshape(N, in_nc, hw_lo).astype(jnp.float32)
    x_flat = jnp.pad(x_flat, ((0, 0), (0, cp - in_nc), (0, 0)))

    w_head = _pack_w(params["head"][0], cin_pad=cp, dtype=mxu_dtype)
    b_head = _pack_b(params["head"][1])
    body_ws, body_bs = [], []
    for (w1, b1), (w2, b2) in params["res"]:
        body_ws += [_pack_w(w1, dtype=mxu_dtype), _pack_w(w2, dtype=mxu_dtype)]
        body_bs += [_pack_b(b1), _pack_b(b2)]
    body_ws.append(_pack_w(params["body_last"][0], dtype=mxu_dtype))
    body_bs.append(_pack_b(params["body_last"][1]))
    w_body = jnp.stack(body_ws)                      # (2*nb+1, nc, 9*nc)
    b_body = jnp.stack(body_bs)                      # (2*nb+1, nc, 1)
    w_up = _pack_w(params["up"][0], dtype=mxu_dtype)
    b_up = _pack_b(params["up"][1])
    w_t0 = _pack_w(params["tail0"][0], dtype=mxu_dtype)
    b_t0 = _pack_b(params["tail0"][1])
    # tail1 output kept at 16 rows in-kernel so the final conv's im2col slab
    # offsets stay multiples of 16 (bf16 sublane tile); HBM output uses 8.
    w_t1 = _pack_w(params["tail1"][0], cout_pad=cp, dtype=mxu_dtype)
    w_fin = _pack_w(params["final"][0], cin_pad=cp, cout_pad=out_cp, dtype=mxu_dtype)

    kernel = functools.partial(
        _srresnet1_kernel, H=H, W=W, nb=nb, roll_np=_roll_is_numpy_like())

    operands = (x_flat, w_head, b_head, w_body, b_body, w_up, b_up,
                w_t0, b_t0, w_t1, w_fin)

    # ---- explicit scoped-VMEM budget (defaults are 16/32/32 MiB) -----------
    const_bytes = sum(int(a.size) * a.dtype.itemsize for a in operands[1:])
    scratch_bytes = (9 * nc + nc) * hw_hi * 2 + nc * hw_lo * 2
    io_bytes = 2 * cp * hw_lo * 4 + 2 * 2 * out_cp * hw_hi * 4
    live_act_bytes = 6 * nc * hw_hi * 4              # rough live-value allowance
    est = 2 * const_bytes + scratch_bytes + io_bytes + live_act_bytes
    vmem_limit = int(min(64 << 20, max(32 << 20, 2 * est)))

    out_shape = (
        jax.ShapeDtypeStruct((N, out_cp, hw_hi), jnp.float32),
        jax.ShapeDtypeStruct((N, out_cp, hw_hi), jnp.float32),
    )
    out_specs = (
        pl.BlockSpec((None, out_cp, hw_hi), lambda n: (n, 0, 0)),
        pl.BlockSpec((None, out_cp, hw_hi), lambda n: (n, 0, 0)),
    )
    scratch_shapes = [
        pltpu.VMEM((9 * nc, hw_hi), mxu_dtype),      # reused im2col slab
        pltpu.VMEM((nc, hw_hi), mxu_dtype),          # upsampled activation
        pltpu.VMEM((nc, hw_lo), mxu_dtype),          # pre-upsample staging
    ]

    def _run(single_buffer_consts):
        def cspec(arr):
            idx = (lambda n: (0, 0)) if arr.ndim == 2 else (lambda n: (0, 0, 0))
            if single_buffer_consts:
                # constant index_map -> no re-DMA ever needed: single-buffer.
                return pl.BlockSpec(arr.shape, idx, pipeline_mode=pl.Buffered(1))
            return pl.BlockSpec(arr.shape, idx)

        in_specs = [pl.BlockSpec((None, cp, hw_lo), lambda n: (n, 0, 0))]
        in_specs += [cspec(a) for a in operands[1:]]

        return pl.pallas_call(
            kernel,
            grid=(N,),
            in_specs=in_specs,
            out_specs=out_specs,
            out_shape=out_shape,
            scratch_shapes=scratch_shapes,
            compiler_params=pltpu.CompilerParams(
                dimension_semantics=("parallel",),   # batch over TCs on v7x
                vmem_limit_bytes=vmem_limit),
            interpret=interpret,
        )(*operands)

    try:
        x_out_p, y_out_p = _run(True)
    except Exception:
        # pl.Buffered(1) not accepted by this JAX/backend: fall back to the
        # default (double-buffered) pipelining for the constant inputs.
        x_out_p, y_out_p = _run(False)

    x_out = x_out_p[:, :out_nc, :].reshape(N, out_nc, H2, W2)
    y_out = y_out_p[:, :out_nc, :].reshape(N, out_nc, H2, W2)
    return x_out, y_out


# ----------------------------------------------------------------------------
# Deterministic synthetic parameters (canonical HWIO layout)
# ----------------------------------------------------------------------------
def make_conv_params(key, cin, cout, bias=True):
    k1, k2 = jax.random.split(key)
    w_oihw = jax.random.normal(k1, (cout, cin, 3, 3), jnp.float32) / math.sqrt(cin * 9)
    w = jnp.transpose(w_oihw, (2, 3, 1, 0))          # -> HWIO (3, 3, Cin, Cout)
    b = 0.01 * jax.random.normal(k2, (cout,), jnp.float32) if bias else None
    return w, b


def build_params(key, in_nc, out_nc, nc, nb):
    keys = iter(jax.random.split(key, 2 * nb + 6))
    return {
        "head": make_conv_params(next(keys), in_nc, nc),
        "res": [(make_conv_params(next(keys), nc, nc),
                 make_conv_params(next(keys), nc, nc)) for _ in range(nb)],
        "body_last": make_conv_params(next(keys), nc, nc),
        "up": make_conv_params(next(keys), nc, nc),
        "tail0": make_conv_params(next(keys), nc, nc),
        "tail1": make_conv_params(next(keys), nc, out_nc, bias=False),
        "final": make_conv_params(next(keys), out_nc, out_nc, bias=False),
    }


# ----------------------------------------------------------------------------
# Pure-JAX reference (mirrors the kernel's bf16-inputs / f32-accumulate math)
# ----------------------------------------------------------------------------
def _conv3x3_ref(x, w, b=None, *, relu=False, mxu_dtype=jnp.bfloat16):
    out = lax.conv_general_dilated(
        x.astype(mxu_dtype), w.astype(mxu_dtype), (1, 1), "SAME",
        dimension_numbers=("NHWC", "HWIO", "NHWC"),
        preferred_element_type=jnp.float32)
    if b is not None:
        out = out + b[None, None, None, :]
    if relu:
        out = jnp.maximum(out, 0.0)
    return out


def srresnet1_reference(x_nchw, params, *, mxu_dtype=jnp.bfloat16):
    cv = functools.partial(_conv3x3_ref, mxu_dtype=mxu_dtype)
    x = jnp.transpose(x_nchw, (0, 2, 3, 1)).astype(jnp.float32)
    w, b = params["head"]
    h0 = cv(x, w, b)
    h = h0
    for (w1, b1), (w2, b2) in params["res"]:
        t = cv(h, w1, b1, relu=True)
        t = cv(t, w2, b2)
        h = h + t
    w, b = params["body_last"]
    h = h0 + cv(h, w, b)
    h = jnp.repeat(jnp.repeat(h, 2, axis=1), 2, axis=2)
    w, b = params["up"]
    h = cv(h, w, b, relu=True)
    w, b = params["tail0"]
    h = cv(h, w, b, relu=True)
    w, _ = params["tail1"]
    xo = cv(h, w, None)
    w, _ = params["final"]
    yo = cv(xo, w, None)
    return (jnp.transpose(xo, (0, 3, 1, 2)), jnp.transpose(yo, (0, 3, 1, 2)))


if __name__ == "__main__":
    # Small config consistent with the module (in_nc=3, out_nc=3, upscale=2).
    N, in_nc, out_nc, nc, nb, H, W = 2, 3, 3, 32, 2, 16, 16

    key = jax.random.PRNGKey(0)
    k_params, k_x = jax.random.split(key)
    params = build_params(k_params, in_nc, out_nc, nc, nb)
    x = jax.random.normal(k_x, (N, in_nc, H, W), jnp.float32)

    x_out, y_out = srresnet1_forward(x, params)
    jax.block_until_ready((x_out, y_out))

    assert x_out.shape == (N, out_nc, 2 * H, 2 * W)
    assert y_out.shape == (N, out_nc, 2 * H, 2 * W)

    # Cross-check against a pure-JAX reference with the same bf16/f32 math.
    x_ref, y_ref = srresnet1_reference(x, params)
    err_x = float(jnp.max(jnp.abs(x_out - x_ref)))
    err_y = float(jnp.max(jnp.abs(y_out - y_ref)))
    assert jnp.allclose(x_out, x_ref, atol=2e-2, rtol=2e-2), err_x
    assert jnp.allclose(y_out, y_ref, atol=2e-2, rtol=2e-2), err_y

    print("KERNEL_OK")
</pallas_src>

<mosaic_0001>
module attributes {stable_mosaic.version = 11 : i64} {
  func.func @_k(%arg0: memref<8x128xf32, #tpu.memory_space<vmem>>, %arg1: memref<8x128xf32, #tpu.memory_space<vmem>>) attributes {dimension_semantics = [], scalar_prefetch = 0 : i64, scratch_operands = 0 : i64, tpu.core_type = #tpu.core_type<tc>} {
    %c0 = arith.constant 0 : index
    %c0_0 = arith.constant 0 : index
    %0 = vector.load %arg0[%c0, %c0_0] : memref<8x128xf32, #tpu.memory_space<vmem>>, vector<8x128xf32>
    %c1_i32 = arith.constant 1 : i32
    %1 = tpu.dynamic_rotate %0 by %c1_i32 dim 1 : vector<8x128xf32>, i32 -> vector<8x128xf32>
    %c0_1 = arith.constant 0 : index
    %c0_2 = arith.constant 0 : index
    %2 = vector.load %arg1[%c0_1, %c0_2] : memref<8x128xf32, #tpu.memory_space<vmem>>, vector<8x128xf32>
    tpu.vector_store %arg1[%c0_1, %c0_2], %1 {strides = array<i32>} : memref<8x128xf32, #tpu.memory_space<vmem>>, vector<8x128xf32>,
    return
  }
}

</mosaic_0001>

<llo_original>
// kernel: tpu_custom_call.1
$region0: #{tpu_custom_call.1}
  #allocation0 [shape = 'u32[]', space=smem, size = 0x4, offset = 0x4, fixed_abs, tag = 'smem constant byte address 0x4 - core index']
  #allocation1 [shape = 'u32[144,128]{1,0:T(1,128)}', space=vmem, size = 0x12000, scoped, tag = 'internal scratch']
  %s0 = inlined_call_operand.hbm [shape: f32[8,128], index: 0, kind: input, shape index: {}]
  %s1 = inlined_call_operand.hbm [shape: f32[8,128], index: 1, kind: output, shape index: {}]
  %s2 = sld [smem:[#allocation0]]
  $region18: #{tpu_custom_call.1} parent=0
    _
  %s4 = ssub.s32 1, %s2
  %s5 = scalar_select 0, %s4, %s2
  $region1: #{tpu_custom_call.1} parent=0
    #allocation2 [shape = 'u8[4096]{0}', space=vmem, size = 0x1000, scoped, tag = 'input window, operand 0, single buffered']
    #allocation3 [shape = 's32[1]{0}', space=sflag, size = 0x4, scoped, tag = 'scoped memory for tpu_custom_call.1']
    #allocation4 [shape = 's32[1]{0}', space=sflag, size = 0x4, scoped, tag = 'scoped memory for tpu_custom_call.1']
    #allocation5 [shape = 'u8[4096]{0}', space=vmem, size = 0x1000, scoped, tag = 'output window, operand 0, single buffered']
    %6 = vsyncpa [#allocation3], 0
    %7 = vsyncpa [#allocation4], 0
    // Predicated region
    $region2: #{tpu_custom_call.1} parent=1 // pred_check
      _
    $region3: #{tpu_custom_call.1} parent=1 // pred_check_branch
      %9 = sbr.rel (0) target = $region5
    $region4: #{tpu_custom_call.1} parent=1 // pred_region
      %s11 = ssub.s32 128, 128
      %12 = vsyncadd [#allocation3], %s11
      %s14 = sshll.u32 [#allocation2], 4
      %s15 = int_to_ptr.vmem [resolvable:$true] %s14
      %17 = dma.hbm_to_vmem [thread:$0]  %s0, 128, %s15, [#allocation3]
    $region5: #{tpu_custom_call.1} parent=1 // pred_fallthru
      _
    // Predicated region
    $region6: #{tpu_custom_call.1} parent=1 // pred_check
      _
    $region7: #{tpu_custom_call.1} parent=1 // pred_check_branch
      %19 = sbr.rel (0) target = $region9
    $region8: #{tpu_custom_call.1} parent=1 // pred_region
      %20 = dma.done [#allocation3], 128
    $region9: #{tpu_custom_call.1} parent=1 // pred_fallthru
      _
    %v21 = vld [vmem:[#allocation2] sm:$0xff]
    %22 = vrot.lane.b32.xlu0 %v21, 1
    %v23 = vpop.permute.xlu0 %22
    %24 = vst [vmem:[#allocation5] sm:$0xff] %v23
    // Predicated region
    $region10: #{tpu_custom_call.1} parent=1 // pred_check
      _
    $region11: #{tpu_custom_call.1} parent=1 // pred_check_branch
      %26 = sbr.rel (0) target = $region13
    $region12: #{tpu_custom_call.1} parent=1 // pred_region
      %s28 = ssub.s32 128, 128
      %29 = vsyncadd [#allocation4], %s28
      %s31 = sshll.u32 [#allocation5], 4
      %s32 = int_to_ptr.vmem [resolvable:$true] %s31
      %34 = dma.vmem_to_hbm [thread:$0]  %s32, 128, %s1, [#allocation4]
    $region13: #{tpu_custom_call.1} parent=1 // pred_fallthru
      _
    // Predicated region
    $region14: #{tpu_custom_call.1} parent=1 // pred_check
      _
    $region15: #{tpu_custom_call.1} parent=1 // pred_check_branch
      %36 = sbr.rel (0) target = $region17
    $region16: #{tpu_custom_call.1} parent=1 // pred_region
      %37 = dma.done [#allocation4], 128
    $region17: #{tpu_custom_call.1} parent=1 // pred_fallthru
      _
    %38 = vsyncpa [#allocation3], 1
    %39 = vsyncpa [#allocation4], 1

</llo_original>
